<compile_context>
chip_gen: v5e
topology: v5e:2x2
jax: 0.10.0
libtpu: 0.0.40
codegen_flags: <defaults>
</compile_context>

<pallas_src>
import math

import jax
import jax.numpy as jnp
import numpy as np
from jax.experimental import pallas as pl
from jax.experimental.pallas import tpu as pltpu

DIM = 128          # feature dim of the ResidualBlock
B = 32             # batch size for the demo
BN_EPS = 1e-5      # nn.BatchNorm1d default eps
MAX_TB = 256       # batch-tile cap (keeps VMEM footprint small for huge B)


def residual_block_kernel(x_ref,
                          w1_ref, b1_ref, g1_ref, be1_ref, m1_ref, v1_ref,
                          w2_ref, b2_ref, g2_ref, be2_ref, m2_ref, v2_ref,
                          o_ref):
    x = x_ref[...]                                              # (TB, DIM) f32

    # Fold each BatchNorm (eval mode, running stats) into scale + shift.
    # rsqrt lowers to the EUP — off the VALU critical path.
    s1 = g1_ref[...] * jax.lax.rsqrt(v1_ref[...] + BN_EPS)
    sh1 = be1_ref[...] - m1_ref[...] * s1
    s2 = g2_ref[...] * jax.lax.rsqrt(v2_ref[...] + BN_EPS)
    sh2 = be2_ref[...] - m2_ref[...] * s2

    # Linear 1: bf16 weights streamed from HBM, f32 accumulation on the MXU.
    h = jnp.dot(x.astype(jnp.bfloat16), w1_ref[...],
                preferred_element_type=jnp.float32) + b1_ref[...]

    # BatchNorm1d #1 + ReLU.  Dropout(p=0.2) is identity in eval-mode forward.
    h = jnp.maximum(h * s1 + sh1, 0.0)

    # Linear 2 + BatchNorm1d #2.
    y = jnp.dot(h.astype(jnp.bfloat16), w2_ref[...],
                preferred_element_type=jnp.float32) + b2_ref[...]
    y = y * s2 + sh2

    # Residual add + final ReLU (lane-dense 128-wide store).
    o_ref[...] = jnp.maximum(x + y, 0.0)


def _pick_batch_tile(bsz):
    # Whole batch in one tile when small; otherwise the largest divisor of the
    # batch that is a multiple of 8 and <= MAX_TB.
    if bsz <= MAX_TB:
        return bsz
    tb = MAX_TB
    while tb >= 8:
        if bsz % tb == 0:
            return tb
        tb -= 8
    raise ValueError(f"batch size {bsz} has no sublane-aligned tile")


def residual_block_forward(params, x):
    bsz, dim = x.shape
    assert dim == DIM
    tb = _pick_batch_tile(bsz)

    vec = pl.BlockSpec((1, DIM), lambda i: (0, 0))       # bias / BN params
    mat = pl.BlockSpec((DIM, DIM), lambda i: (0, 0))     # bf16 weight matrices
    in_specs = [
        pl.BlockSpec((tb, DIM), lambda i: (i, 0)),       # x (batch tile)
        mat, vec, vec, vec, vec, vec,                    # linear1 / bn1
        mat, vec, vec, vec, vec, vec,                    # linear2 / bn2
    ]
    return pl.pallas_call(
        residual_block_kernel,
        out_shape=jax.ShapeDtypeStruct((bsz, DIM), jnp.float32),
        grid=(bsz // tb,),
        in_specs=in_specs,
        out_specs=pl.BlockSpec((tb, DIM), lambda i: (i, 0)),
        compiler_params=pltpu.CompilerParams(
            dimension_semantics=("parallel",)),
    )(x,
      params["w1_t"], params["b1"], params["g1"], params["be1"],
      params["m1"], params["v1"],
      params["w2_t"], params["b2"], params["g2"], params["be2"],
      params["m2"], params["v2"])


def init_params(key):
    ks = jax.random.split(key, 12)
    bound = 1.0 / math.sqrt(DIM)

    def u(k, shape):
        return jax.random.uniform(k, shape, jnp.float32, -bound, bound)

    p = {}
    # nn.Linear weights stored pre-transposed to (in, out), streamed as bf16.
    p["w1_t"] = u(ks[0], (DIM, DIM)).astype(jnp.bfloat16)
    p["b1"] = u(ks[1], (1, DIM))
    p["w2_t"] = u(ks[2], (DIM, DIM)).astype(jnp.bfloat16)
    p["b2"] = u(ks[3], (1, DIM))
    # BatchNorm1d affine params + running stats (non-trivial values so the
    # test exercises the BN math; a fresh PyTorch module would have
    # gamma=1, beta=0, running_mean=0, running_var=1).
    p["g1"] = 1.0 + 0.1 * jax.random.normal(ks[4], (1, DIM), jnp.float32)
    p["be1"] = 0.1 * jax.random.normal(ks[5], (1, DIM), jnp.float32)
    p["m1"] = 0.1 * jax.random.normal(ks[6], (1, DIM), jnp.float32)
    p["v1"] = jax.random.uniform(ks[7], (1, DIM), jnp.float32, 0.5, 1.5)
    p["g2"] = 1.0 + 0.1 * jax.random.normal(ks[8], (1, DIM), jnp.float32)
    p["be2"] = 0.1 * jax.random.normal(ks[9], (1, DIM), jnp.float32)
    p["m2"] = 0.1 * jax.random.normal(ks[10], (1, DIM), jnp.float32)
    p["v2"] = jax.random.uniform(ks[11], (1, DIM), jnp.float32, 0.5, 1.5)
    return p


def reference_forward(params, x):
    """Plain-JAX reference mirroring the PyTorch forward (eval mode), using the
    same bf16 weight streaming / f32 accumulation as the kernel."""
    def bn(z, g, b, m, v):
        s = g * jax.lax.rsqrt(v + BN_EPS)
        return z * s + (b - m * s)

    h = jnp.dot(x.astype(jnp.bfloat16), params["w1_t"],
                preferred_element_type=jnp.float32) + params["b1"]
    h = jnp.maximum(
        bn(h, params["g1"], params["be1"], params["m1"], params["v1"]), 0.0)
    y = jnp.dot(h.astype(jnp.bfloat16), params["w2_t"],
                preferred_element_type=jnp.float32) + params["b2"]
    y = bn(y, params["g2"], params["be2"], params["m2"], params["v2"])
    return jnp.maximum(x + y, 0.0)


if __name__ == "__main__":
    key = jax.random.PRNGKey(0)
    kp, kx = jax.random.split(key, 2)
    params = init_params(kp)
    x = jax.random.normal(kx, (B, DIM), jnp.float32)

    out = residual_block_forward(params, x)
    out = jax.block_until_ready(out)

    ref = reference_forward(params, x)
    assert out.shape == (B, DIM)
    np.testing.assert_allclose(np.asarray(out), np.asarray(ref),
                               atol=2e-3, rtol=2e-3)
    print("KERNEL_OK")
</pallas_src>

<mosaic_0001>
module attributes {stable_mosaic.version = 11 : i64} {
  func.func @residual_block_kernel(%arg0: i32, %arg1: memref<32x128xf32, #tpu.memory_space<vmem>>, %arg2: memref<128x128xbf16, #tpu.memory_space<vmem>>, %arg3: memref<1x128xf32, #tpu.memory_space<vmem>>, %arg4: memref<1x128xf32, #tpu.memory_space<vmem>>, %arg5: memref<1x128xf32, #tpu.memory_space<vmem>>, %arg6: memref<1x128xf32, #tpu.memory_space<vmem>>, %arg7: memref<1x128xf32, #tpu.memory_space<vmem>>, %arg8: memref<128x128xbf16, #tpu.memory_space<vmem>>, %arg9: memref<1x128xf32, #tpu.memory_space<vmem>>, %arg10: memref<1x128xf32, #tpu.memory_space<vmem>>, %arg11: memref<1x128xf32, #tpu.memory_space<vmem>>, %arg12: memref<1x128xf32, #tpu.memory_space<vmem>>, %arg13: memref<1x128xf32, #tpu.memory_space<vmem>>, %arg14: memref<32x128xf32, #tpu.memory_space<vmem>>) attributes {dimension_semantics = [#tpu.dimension_semantics<parallel>], iteration_bounds = array<i64: 1>, scalar_prefetch = 0 : i64, scratch_operands = 0 : i64, tpu.core_type = #tpu.core_type<tc>, window_params = [{transform_indices = @transform_0, window_bounds = array<i64: 32, 128>}, {pipeline_mode = #tpu.pipeline_mode<synchronous>, transform_indices = @transform_1, window_bounds = array<i64: 128, 128>}, {pipeline_mode = #tpu.pipeline_mode<synchronous>, transform_indices = @transform_2, window_bounds = array<i64: 1, 128>}, {pipeline_mode = #tpu.pipeline_mode<synchronous>, transform_indices = @transform_3, window_bounds = array<i64: 1, 128>}, {pipeline_mode = #tpu.pipeline_mode<synchronous>, transform_indices = @transform_4, window_bounds = array<i64: 1, 128>}, {pipeline_mode = #tpu.pipeline_mode<synchronous>, transform_indices = @transform_5, window_bounds = array<i64: 1, 128>}, {pipeline_mode = #tpu.pipeline_mode<synchronous>, transform_indices = @transform_6, window_bounds = array<i64: 1, 128>}, {pipeline_mode = #tpu.pipeline_mode<synchronous>, transform_indices = @transform_7, window_bounds = array<i64: 128, 128>}, {pipeline_mode = #tpu.pipeline_mode<synchronous>, transform_indices = @transform_8, window_bounds = array<i64: 1, 128>}, {pipeline_mode = #tpu.pipeline_mode<synchronous>, transform_indices = @transform_9, window_bounds = array<i64: 1, 128>}, {pipeline_mode = #tpu.pipeline_mode<synchronous>, transform_indices = @transform_10, window_bounds = array<i64: 1, 128>}, {pipeline_mode = #tpu.pipeline_mode<synchronous>, transform_indices = @transform_11, window_bounds = array<i64: 1, 128>}, {pipeline_mode = #tpu.pipeline_mode<synchronous>, transform_indices = @transform_12, window_bounds = array<i64: 1, 128>}, {transform_indices = @transform_13, window_bounds = array<i64: 32, 128>}]} {
    %c0 = arith.constant 0 : index
    %c0_0 = arith.constant 0 : index
    %0 = vector.load %arg1[%c0, %c0_0] : memref<32x128xf32, #tpu.memory_space<vmem>>, vector<32x128xf32>
    %c0_1 = arith.constant 0 : index
    %c0_2 = arith.constant 0 : index
    %1 = vector.load %arg4[%c0_1, %c0_2] : memref<1x128xf32, #tpu.memory_space<vmem>>, vector<1x128xf32>
    %c0_3 = arith.constant 0 : index
    %c0_4 = arith.constant 0 : index
    %2 = vector.load %arg7[%c0_3, %c0_4] : memref<1x128xf32, #tpu.memory_space<vmem>>, vector<1x128xf32>
    %cst = arith.constant 9.99999974E-6 : f32
    %3 = vector.broadcast %cst : f32 to vector<1x128xf32>
    %4 = arith.addf %2, %3 : vector<1x128xf32>
    %5 = math.rsqrt %4 : vector<1x128xf32>
    %6 = arith.mulf %1, %5 : vector<1x128xf32>
    %c0_5 = arith.constant 0 : index
    %c0_6 = arith.constant 0 : index
    %7 = vector.load %arg5[%c0_5, %c0_6] : memref<1x128xf32, #tpu.memory_space<vmem>>, vector<1x128xf32>
    %c0_7 = arith.constant 0 : index
    %c0_8 = arith.constant 0 : index
    %8 = vector.load %arg6[%c0_7, %c0_8] : memref<1x128xf32, #tpu.memory_space<vmem>>, vector<1x128xf32>
    %9 = arith.mulf %8, %6 : vector<1x128xf32>
    %10 = arith.subf %7, %9 : vector<1x128xf32>
    %c0_9 = arith.constant 0 : index
    %c0_10 = arith.constant 0 : index
    %11 = vector.load %arg10[%c0_9, %c0_10] : memref<1x128xf32, #tpu.memory_space<vmem>>, vector<1x128xf32>
    %c0_11 = arith.constant 0 : index
    %c0_12 = arith.constant 0 : index
    %12 = vector.load %arg13[%c0_11, %c0_12] : memref<1x128xf32, #tpu.memory_space<vmem>>, vector<1x128xf32>
    %cst_13 = arith.constant 9.99999974E-6 : f32
    %13 = vector.broadcast %cst_13 : f32 to vector<1x128xf32>
    %14 = arith.addf %12, %13 : vector<1x128xf32>
    %15 = math.rsqrt %14 : vector<1x128xf32>
    %16 = arith.mulf %11, %15 : vector<1x128xf32>
    %c0_14 = arith.constant 0 : index
    %c0_15 = arith.constant 0 : index
    %17 = vector.load %arg11[%c0_14, %c0_15] : memref<1x128xf32, #tpu.memory_space<vmem>>, vector<1x128xf32>
    %c0_16 = arith.constant 0 : index
    %c0_17 = arith.constant 0 : index
    %18 = vector.load %arg12[%c0_16, %c0_17] : memref<1x128xf32, #tpu.memory_space<vmem>>, vector<1x128xf32>
    %19 = arith.mulf %18, %16 : vector<1x128xf32>
    %20 = arith.subf %17, %19 : vector<1x128xf32>
    %21 = arith.truncf %0 : vector<32x128xf32> to vector<32x128xbf16>
    %c0_18 = arith.constant 0 : index
    %c0_19 = arith.constant 0 : index
    %22 = vector.load %arg2[%c0_18, %c0_19] : memref<128x128xbf16, #tpu.memory_space<vmem>>, vector<128x128xbf16>
    %cst_20 = arith.constant dense<0.000000e+00> : vector<32x128xf32>
    %23 = tpu.matmul %21, %22, %cst_20 {dimension_numbers = #tpu.dot_dimension_numbers<[1], [0], [0], [1], [0, 0, 1, 1], [], []>} : vector<32x128xbf16>, vector<128x128xbf16>, vector<32x128xf32> -> vector<32x128xf32>
    %c0_21 = arith.constant 0 : index
    %c0_22 = arith.constant 0 : index
    %24 = vector.load %arg3[%c0_21, %c0_22] : memref<1x128xf32, #tpu.memory_space<vmem>>, vector<1x128xf32>
    %25 = vector.broadcast %24 : vector<1x128xf32> to vector<32x128xf32>
    %26 = arith.addf %23, %25 : vector<32x128xf32>
    %27 = vector.broadcast %6 : vector<1x128xf32> to vector<32x128xf32>
    %28 = arith.mulf %26, %27 : vector<32x128xf32>
    %29 = vector.broadcast %10 : vector<1x128xf32> to vector<32x128xf32>
    %30 = arith.addf %28, %29 : vector<32x128xf32>
    %cst_23 = arith.constant 0.000000e+00 : f32
    %31 = vector.broadcast %cst_23 : f32 to vector<32x128xf32>
    %32 = arith.maximumf %30, %31 : vector<32x128xf32>
    %33 = arith.truncf %32 : vector<32x128xf32> to vector<32x128xbf16>
    %c0_24 = arith.constant 0 : index
    %c0_25 = arith.constant 0 : index
    %34 = vector.load %arg8[%c0_24, %c0_25] : memref<128x128xbf16, #tpu.memory_space<vmem>>, vector<128x128xbf16>
    %cst_26 = arith.constant dense<0.000000e+00> : vector<32x128xf32>
    %35 = tpu.matmul %33, %34, %cst_26 {dimension_numbers = #tpu.dot_dimension_numbers<[1], [0], [0], [1], [0, 0, 1, 1], [], []>} : vector<32x128xbf16>, vector<128x128xbf16>, vector<32x128xf32> -> vector<32x128xf32>
    %c0_27 = arith.constant 0 : index
    %c0_28 = arith.constant 0 : index
    %36 = vector.load %arg9[%c0_27, %c0_28] : memref<1x128xf32, #tpu.memory_space<vmem>>, vector<1x128xf32>
    %37 = vector.broadcast %36 : vector<1x128xf32> to vector<32x128xf32>
    %38 = arith.addf %35, %37 : vector<32x128xf32>
    %39 = vector.broadcast %16 : vector<1x128xf32> to vector<32x128xf32>
    %40 = arith.mulf %38, %39 : vector<32x128xf32>
    %41 = vector.broadcast %20 : vector<1x128xf32> to vector<32x128xf32>
    %42 = arith.addf %40, %41 : vector<32x128xf32>
    %43 = arith.addf %0, %42 : vector<32x128xf32>
    %cst_29 = arith.constant 0.000000e+00 : f32
    %44 = vector.broadcast %cst_29 : f32 to vector<32x128xf32>
    %45 = arith.maximumf %43, %44 : vector<32x128xf32>
    %c0_30 = arith.constant 0 : index
    %c0_31 = arith.constant 0 : index
    %46 = vector.load %arg14[%c0_30, %c0_31] : memref<32x128xf32, #tpu.memory_space<vmem>>, vector<32x128xf32>
    tpu.vector_store %arg14[%c0_30, %c0_31], %45 {strides = array<i32>} : memref<32x128xf32, #tpu.memory_space<vmem>>, vector<32x128xf32>,
    return
  }
  func.func @transform_0(%arg0: i32) -> (i32, i32) {
    %c0_i32 = arith.constant 0 : i32
    %c0_i32_0 = arith.constant 0 : i32
    return %arg0, %c0_i32 : i32, i32
  }
  func.func @transform_1(%arg0: i32) -> (i32, i32) {
    %c0_i32 = arith.constant 0 : i32
    %c0_i32_0 = arith.constant 0 : i32
    %c0_i32_1 = arith.constant 0 : i32
    return %c0_i32, %c0_i32_0 : i32, i32
  }
  func.func @transform_2(%arg0: i32) -> (i32, i32) {
    %c0_i32 = arith.constant 0 : i32
    %c0_i32_0 = arith.constant 0 : i32
    %c0_i32_1 = arith.constant 0 : i32
    return %c0_i32, %c0_i32_0 : i32, i32
  }
  func.func @transform_3(%arg0: i32) -> (i32, i32) {
    %c0_i32 = arith.constant 0 : i32
    %c0_i32_0 = arith.constant 0 : i32
    %c0_i32_1 = arith.constant 0 : i32
    return %c0_i32, %c0_i32_0 : i32, i32
  }
  func.func @transform_4(%arg0: i32) -> (i32, i32) {
    %c0_i32 = arith.constant 0 : i32
    %c0_i32_0 = arith.constant 0 : i32
    %c0_i32_1 = arith.constant 0 : i32
    return %c0_i32, %c0_i32_0 : i32, i32
  }
  func.func @transform_5(%arg0: i32) -> (i32, i32) {
    %c0_i32 = arith.constant 0 : i32
    %c0_i32_0 = arith.constant 0 : i32
    %c0_i32_1 = arith.constant 0 : i32
    return %c0_i32, %c0_i32_0 : i32, i32
  }
  func.func @transform_6(%arg0: i32) -> (i32, i32) {
    %c0_i32 = arith.constant 0 : i32
    %c0_i32_0 = arith.constant 0 : i32
    %c0_i32_1 = arith.constant 0 : i32
    return %c0_i32, %c0_i32_0 : i32, i32
  }
  func.func @transform_7(%arg0: i32) -> (i32, i32) {
    %c0_i32 = arith.constant 0 : i32
    %c0_i32_0 = arith.constant 0 : i32
    %c0_i32_1 = arith.constant 0 : i32
    return %c0_i32, %c0_i32_0 : i32, i32
  }
  func.func @transform_8(%arg0: i32) -> (i32, i32) {
    %c0_i32 = arith.constant 0 : i32
    %c0_i32_0 = arith.constant 0 : i32
    %c0_i32_1 = arith.constant 0 : i32
    return %c0_i32, %c0_i32_0 : i32, i32
  }
  func.func @transform_9(%arg0: i32) -> (i32, i32) {
    %c0_i32 = arith.constant 0 : i32
    %c0_i32_0 = arith.constant 0 : i32
    %c0_i32_1 = arith.constant 0 : i32
    return %c0_i32, %c0_i32_0 : i32, i32
  }
  func.func @transform_10(%arg0: i32) -> (i32, i32) {
    %c0_i32 = arith.constant 0 : i32
    %c0_i32_0 = arith.constant 0 : i32
    %c0_i32_1 = arith.constant 0 : i32
    return %c0_i32, %c0_i32_0 : i32, i32
  }
  func.func @transform_11(%arg0: i32) -> (i32, i32) {
    %c0_i32 = arith.constant 0 : i32
    %c0_i32_0 = arith.constant 0 : i32
    %c0_i32_1 = arith.constant 0 : i32
    return %c0_i32, %c0_i32_0 : i32, i32
  }
  func.func @transform_12(%arg0: i32) -> (i32, i32) {
    %c0_i32 = arith.constant 0 : i32
    %c0_i32_0 = arith.constant 0 : i32
    %c0_i32_1 = arith.constant 0 : i32
    return %c0_i32, %c0_i32_0 : i32, i32
  }
  func.func @transform_13(%arg0: i32) -> (i32, i32) {
    %c0_i32 = arith.constant 0 : i32
    %c0_i32_0 = arith.constant 0 : i32
    return %arg0, %c0_i32 : i32, i32
  }
}

</mosaic_0001>

<llo_original>
// kernel: tpu_custom_call.1
$region0: #{tpu_custom_call.1}
  #allocation0 [shape = 'u32[]', space=smem, size = 0x4, offset = 0x4, fixed_abs, tag = 'smem constant byte address 0x4 - core index']
  #allocation1 [shape = 'u32[72,128]{1,0:T(1,128)}', space=vmem, size = 0x9000, scoped, tag = 'internal scratch']
  %s0 = inlined_call_operand.hbm [shape: f32[32,128], index: 0, kind: input, shape index: {}]
  %s1 = inlined_call_operand.hbm [shape: bf16[128,128], index: 1, kind: input, shape index: {}]
  %s2 = inlined_call_operand.vmem [shape: f32[1,128], index: 2, kind: input, shape index: {}]
  %s3 = inlined_call_operand.vmem [shape: f32[1,128], index: 3, kind: input, shape index: {}]
  %s4 = inlined_call_operand.vmem [shape: f32[1,128], index: 4, kind: input, shape index: {}]
  %s5 = inlined_call_operand.vmem [shape: f32[1,128], index: 5, kind: input, shape index: {}]
  %s6 = inlined_call_operand.vmem [shape: f32[1,128], index: 6, kind: input, shape index: {}]
  %s7 = inlined_call_operand.hbm [shape: bf16[128,128], index: 7, kind: input, shape index: {}]
  %s8 = inlined_call_operand.vmem [shape: f32[1,128], index: 8, kind: input, shape index: {}]
  %s9 = inlined_call_operand.vmem [shape: f32[1,128], index: 9, kind: input, shape index: {}]
  %s10 = inlined_call_operand.vmem [shape: f32[1,128], index: 10, kind: input, shape index: {}]
  %s11 = inlined_call_operand.vmem [shape: f32[1,128], index: 11, kind: input, shape index: {}]
  %s12 = inlined_call_operand.vmem [shape: f32[1,128], index: 12, kind: input, shape index: {}]
  %s13 = inlined_call_operand.hbm [shape: f32[32,128], index: 13, kind: output, shape index: {}]
  %s14 = sld [smem:[#allocation0]]
  $region74: #{tpu_custom_call.1} parent=0
    _
  %s16 = ssub.s32 1, %s14
  %s17 = scalar_select 0, %s16, %s14
  $region1: #{tpu_custom_call.1} parent=0
    #allocation2 [shape = 'u8[16384]{0}', space=vmem, size = 0x4000, scoped, tag = 'input window, operand 0, single buffered']
    #allocation3 [shape = 's32[1]{0}', space=sflag, size = 0x4, scoped, tag = 'scoped memory for tpu_custom_call.1']
    #allocation4 [shape = 's32[1]{0}', space=sflag, size = 0x4, scoped, tag = 'scoped memory for tpu_custom_call.1']
    #allocation5 [shape = 'u8[32768]{0}', space=vmem, size = 0x8000, scoped, tag = 'input window, operand 1, single buffered']
    #allocation6 [shape = 's32[1]{0}', space=sflag, size = 0x4, scoped, tag = 'scoped memory for tpu_custom_call.1']
    #allocation7 [shape = 'u8[32768]{0}', space=vmem, size = 0x8000, scoped, tag = 'input window, operand 7, single buffered']
    #allocation8 [shape = 'u8[16384]{0}', space=vmem, size = 0x4000, scoped, tag = 'output window, operand 0, single buffered']
    %18 = vsyncpa [#allocation3], 0
    %19 = vsyncpa [#allocation6], 0
    %20 = vsyncpa [#allocation4], 0
    // Predicated region
    $region2: #{tpu_custom_call.1} parent=1 // pred_check
      _
    $region3: #{tpu_custom_call.1} parent=1 // pred_check_branch
      %22 = sbr.rel (0) target = $region5
    $region4: #{tpu_custom_call.1} parent=1 // pred_region
      %24 = vsyncadd [#allocation3], 0
      %s25 = sshll.u32 %s0, 4
      %s26 = int_to_ptr.hbm [resolvable:$true] %s25
      %s27 = sshll.u32 [#allocation2], 4
      %s28 = int_to_ptr.vmem [resolvable:$true] %s27
      %33 = dma.hbm_to_vmem [thread:$0]  %s26, 512, %s28, [#allocation3], 128, 128, 8
    $region5: #{tpu_custom_call.1} parent=1 // pred_fallthru
      _
    // Predicated region
    $region6: #{tpu_custom_call.1} parent=1 // pred_check
      _
    $region7: #{tpu_custom_call.1} parent=1 // pred_check_branch
      %35 = sbr.rel (0) target = $region9
    $region8: #{tpu_custom_call.1} parent=1 // pred_region
      %37 = vsyncadd [#allocation6], 0
      %s38 = sshll.u32 %s1, 4
      %s39 = int_to_ptr.hbm [resolvable:$true] %s38
      %s40 = sshll.u32 [#allocation5], 4
      %s41 = int_to_ptr.vmem [resolvable:$true] %s40
      %46 = dma.hbm_to_vmem [thread:$0]  %s39, 1024, %s41, [#allocation6], 64, 64, 4
    $region9: #{tpu_custom_call.1} parent=1 // pred_fallthru
      _
    // Predicated region
    $region10: #{tpu_custom_call.1} parent=1 // pred_check
      _
    $region11: #{tpu_custom_call.1} parent=1 // pred_check_branch
      %48 = sbr.rel (0) target = $region13
    $region12: #{tpu_custom_call.1} parent=1 // pred_region
      _
    $region13: #{tpu_custom_call.1} parent=1 // pred_fallthru
      _
    // Predicated region
    $region14: #{tpu_custom_call.1} parent=1 // pred_check
      _
    $region15: #{tpu_custom_call.1} parent=1 // pred_check_branch
      %50 = sbr.rel (0) target = $region17
    $region16: #{tpu_custom_call.1} parent=1 // pred_region
      _
    $region17: #{tpu_custom_call.1} parent=1 // pred_fallthru
      _
    // Predicated region
    $region18: #{tpu_custom_call.1} parent=1 // pred_check
      _
    $region19: #{tpu_custom_call.1} parent=1 // pred_check_branch
      %52 = sbr.rel (0) target = $region21
    $region20: #{tpu_custom_call.1} parent=1 // pred_region
      _
    $region21: #{tpu_custom_call.1} parent=1 // pred_fallthru
      _
    // Predicated region
    $region22: #{tpu_custom_call.1} parent=1 // pred_check
      _
    $region23: #{tpu_custom_call.1} parent=1 // pred_check_branch
      %54 = sbr.rel (0) target = $region25
    $region24: #{tpu_custom_call.1} parent=1 // pred_region
      _
    $region25: #{tpu_custom_call.1} parent=1 // pred_fallthru
      _
    // Predicated region
    $region26: #{tpu_custom_call.1} parent=1 // pred_check
      _
    $region27: #{tpu_custom_call.1} parent=1 // pred_check_branch
      %56 = sbr.rel (0) target = $region29
    $region28: #{tpu_custom_call.1} parent=1 // pred_region
      _
    $region29: #{tpu_custom_call.1} parent=1 // pred_fallthru
      _
    // Predicated region
    $region30: #{tpu_custom_call.1} parent=1 // pred_check
      _
    $region31: #{tpu_custom_call.1} parent=1 // pred_check_branch
      %58 = sbr.rel (0) target = $region33
    $region32: #{tpu_custom_call.1} parent=1 // pred_region
      %60 = vsyncadd [#allocation6], 0
      %s61 = sshll.u32 %s7, 4
      %s62 = int_to_ptr.hbm [resolvable:$true] %s61
      %s63 = sshll.u32 [#allocation7], 4
      %s64 = int_to_ptr.vmem [resolvable:$true] %s63
      %69 = dma.hbm_to_vmem [thread:$0]  %s62, 1024, %s64, [#allocation6], 64, 64, 4
    $region33: #{tpu_custom_call.1} parent=1 // pred_fallthru
      _
    // Predicated region
    $region34: #{tpu_custom_call.1} parent=1 // pred_check
      _
    $region35: #{tpu_custom_call.1} parent=1 // pred_check_branch
      %71 = sbr.rel (0) target = $region37
    $region36: #{tpu_custom_call.1} parent=1 // pred_region
      _
    $region37: #{tpu_custom_call.1} parent=1 // pred_fallthru
      _
    // Predicated region
    $region38: #{tpu_custom_call.1} parent=1 // pred_check
      _
    $region39: #{tpu_custom_call.1} parent=1 // pred_check_branch
      %73 = sbr.rel (0) target = $region41
    $region40: #{tpu_custom_call.1} parent=1 // pred_region
      _
    $region41: #{tpu_custom_call.1} parent=1 // pred_fallthru
      _
    // Predicated region
    $region42: #{tpu_custom_call.1} parent=1 // pred_check
      _
    $region43: #{tpu_custom_call.1} parent=1 // pred_check_branch
      %75 = sbr.rel (0) target = $region45
    $region44: #{tpu_custom_call.1} parent=1 // pred_region
      _
    $region45: #{tpu_custom_call.1} parent=1 // pred_fallthru
      _
    // Predicated region
    $region46: #{tpu_custom_call.1} parent=1 // pred_check
      _
    $region47: #{tpu_custom_call.1} parent=1 // pred_check_branch
      %77 = sbr.rel (0) target = $region49
    $region48: #{tpu_custom_call.1} parent=1 // pred_region
      _
    $region49: #{tpu_custom_call.1} parent=1 // pred_fallthru
      _
    // Predicated region
    $region50: #{tpu_custom_call.1} parent=1 // pred_check
      _
    $region51: #{tpu_custom_call.1} parent=1 // pred_check_branch
      %79 = sbr.rel (0) target = $region53
    $region52: #{tpu_custom_call.1} parent=1 // pred_region
      _
    $region53: #{tpu_custom_call.1} parent=1 // pred_fallthru
      _
    // Predicated region
    $region54: #{tpu_custom_call.1} parent=1 // pred_check
      _
    $region55: #{tpu_custom_call.1} parent=1 // pred_check_branch
      %81 = sbr.rel (0) target = $region57
    $region56: #{tpu_custom_call.1} parent=1 // pred_region
      %83 = dma.done [#allocation3], 512
    $region57: #{tpu_custom_call.1} parent=1 // pred_fallthru
      _
    // Predicated region
    $region58: #{tpu_custom_call.1} parent=1 // pred_check
      _
    $region59: #{tpu_custom_call.1} parent=1 // pred_check_branch
      %85 = sbr.rel (0) target = $region61
    $region60: #{tpu_custom_call.1} parent=1 // pred_region
      %87 = dma.done [#allocation6], 1024
    $region61: #{tpu_custom_call.1} parent=1 // pred_fallthru
      _
    // Predicated region
    $region62: #{tpu_custom_call.1} parent=1 // pred_check
      _
    $region63: #{tpu_custom_call.1} parent=1 // pred_check_branch
      %89 = sbr.rel (0) target = $region65
    $region64: #{tpu_custom_call.1} parent=1 // pred_region
      %91 = dma.done [#allocation6], 1024
    $region65: #{tpu_custom_call.1} parent=1 // pred_fallthru
      _
    %v92 = vld [vmem:[#allocation2] sm:$0xff]
    %v93 = vld [vmem:[#allocation2 + $0x8] sm:$0xff]
    %v94 = vld [vmem:[#allocation2 + $0x10] sm:$0xff]
    %v95 = vld [vmem:[#allocation2 + $0x18] sm:$0xff]
    %v96 = vld [vmem:[%s3] sm:$0x1]
    %v97 = vld [vmem:[%s6] sm:$0x1]
    %v98 = vadd.f32 %v97, 1e-05
    %v99 = vrsqrt.pop %v98
    %v100 = vmul.f32 %v99, %v98
    %v101 = vmul.f32 %v100, %v99
    %v102 = vmul.f32 0.5, %v101
    %v103 = vsub.f32 1.5, %v102
    %v104 = vmul.f32 %v99, %v103
    %vm105 = vweird.f32 %v98
    %vm106 = vweird.f32 %v99
    %vm107 = vmor %vm105, %vm106
    %v108 = vsel %vm107, %v99, %v104
    %v109 = vmul.f32 %v96, %v108
    %v110 = vld [vmem:[%s4] sm:$0x1]
    %v111 = vld [vmem:[%s5] sm:$0x1]
    %v112 = vmul.f32 %v111, %v109
    %v113 = vsub.f32 %v110, %v112
    %v114 = vld [vmem:[%s9] sm:$0x1]
    %v115 = vld [vmem:[%s12] sm:$0x1]
    %v116 = vadd.f32 %v115, 1e-05
    %v117 = vrsqrt.pop %v116
    %v118 = vmul.f32 %v117, %v116
    %v119 = vmul.f32 %v118, %v117
    %v120 = vmul.f32 0.5, %v119
    %v121 = vsub.f32 1.5, %v120
    %v122 = vmul.f32 %v117, %v121
    %vm123 = vweird.f32 %v116
    %vm124 = vweird.f32 %v117
    %vm125 = vmor %vm123, %vm124
    %v126 = vsel %vm125, %v117, %v122
    %v127 = vmul.f32 %v114, %v126
    %v128 = vld [vmem:[%s10] sm:$0x1]
    %v129 = vld [vmem:[%s11] sm:$0x1]
    %v130 = vmul.f32 %v129, %v127
    %v131 = vsub.f32 %v128, %v130
    %v132 = vpack.c.bf16 %v93, %v92
    %v133 = vpack.c.bf16 %v95, %v94
    %v134 = vld [vmem:[#allocation5] sm:$0xf]
    %v135 = vld [vmem:[#allocation5 + $0x4] sm:$0xf]
    %v136 = vld [vmem:[#allocation5 + $0x8] sm:$0xf]
    %v137 = vld [vmem:[#allocation5 + $0xc] sm:$0xf]
    %v138 = vld [vmem:[#allocation5 + $0x10] sm:$0xf]
    %v139 = vld [vmem:[#allocation5 + $0x14] sm:$0xf]
    %v140 = vld [vmem:[#allocation5 + $0x18] sm:$0xf]
    %v141 = vld [vmem:[#allocation5 + $0x1c] sm:$0xf]
    %v142 = vld [vmem:[#allocation5 + $0x20] sm:$0xf]
    %v143 = vld [vmem:[#allocation5 + $0x24] sm:$0xf]
    %v144 = vld [vmem:[#allocation5 + $0x28] sm:$0xf]
    %v145 = vld [vmem:[#allocation5 + $0x2c] sm:$0xf]
    %v146 = vld [vmem:[#allocation5 + $0x30] sm:$0xf]
    %v147 = vld [vmem:[#allocation5 + $0x34] sm:$0xf]
    %v148 = vld [vmem:[#allocation5 + $0x38] sm:$0xf]
    %v149 = vld [vmem:[#allocation5 + $0x3c] sm:$0xf]
    %v150 = vld [vmem:[%s2] sm:$0x1]
    %v152 = vperm.slane %v150, 0
    %v170 = vunpack.c.l.b16 %v134
    %v171 = vunpack.c.l.b16 %v135
    %v172 = vunpack.c.l.b16 %v136
    %v173 = vunpack.c.l.b16 %v137
    %v174 = vunpack.c.l.b16 %v138
    %v175 = vunpack.c.l.b16 %v139
    %v176 = vunpack.c.l.b16 %v140
    %v177 = vunpack.c.l.b16 %v141
    %v178 = vunpack.c.l.b16 %v142
    %v179 = vunpack.c.l.b16 %v143
    %v180 = vunpack.c.l.b16 %v144
    %v181 = vunpack.c.l.b16 %v145
    %v182 = vunpack.c.l.b16 %v146
    %v183 = vunpack.c.l.b16 %v147
    %v184 = vunpack.c.l.b16 %v148
    %v185 = vunpack.c.l.b16 %v149
    %v186 = vpack.c.b16 %v171, %v170
    %v187 = vpack.c.b16 %v173, %v172
    %v188 = vpack.c.b16 %v175, %v174
    %v189 = vpack.c.b16 %v177, %v176
    %v190 = vpack.c.b16 %v179, %v178
    %v191 = vpack.c.b16 %v181, %v180
    %v192 = vpack.c.b16 %v183, %v182
    %v193 = vpack.c.b16 %v185, %v184
    %202 = vmatpush.bf16.msra.mxu0 %v193
    %203 = vmatpush.bf16.msra.mxu0 %v192
    %204 = vmatpush.bf16.msra.mxu0 %v191
    %205 = vmatpush.bf16.msra.mxu0 %v190
    %206 = vmatpush.bf16.msra.mxu0 %v189
    %207 = vmatpush.bf16.msra.mxu0 %v188
    %208 = vmatpush.bf16.msra.mxu0 %v187
    %209 = vmatpush.bf16.msra.mxu0 %v186
    %210 = vmatmul.bf16.gmra.mxu0 %v132
    %v211 = vpop.f32.mrf.mxu0
    %v212 = vadd.f32 %v152, %v211
    %v213 = vpop.f32.mrf.mxu0
    %v214 = vadd.f32 %v152, %v213
    %215 = vmatmul.bf16.gmra.mxu0 %v133
    %v216 = vpop.f32.mrf.mxu0
    %v217 = vadd.f32 %v152, %v216
    %v218 = vpop.f32.mrf.mxu0
    %v219 = vadd.f32 %v152, %v218
    %220 = vdwg.mxu0
    %v222 = vperm.slane %v109, 0
    %v224 = vmul.f32 %v212, %v222
    %v225 = vmul.f32 %v214, %v222
    %v226 = vmul.f32 %v217, %v222
    %v227 = vmul.f32 %v219, %v222
    %v229 = vperm.slane %v113, 0
    %v231 = vadd.f32 %v224, %v229
    %v232 = vadd.f32 %v225, %v229
    %v233 = vadd.f32 %v226, %v229
    %v234 = vadd.f32 %v227, %v229
    %v235 = vmax.f32 %v231, 0.0
    %v236 = vmax.f32 %v232, 0.0
    %v237 = vmax.f32 %v233, 0.0
    %v238 = vmax.f32 %v234, 0.0
    %v239 = vpack.c.bf16 %v236, %v235
    %v240 = vpack.c.bf16 %v238, %v237
    %v241 = vld [vmem:[#allocation7] sm:$0xf]
    %v242 = vld [vmem:[#allocation7 + $0x4] sm:$0xf]
    %v243 = vld [vmem:[#allocation7 + $0x8] sm:$0xf]
    %v244 = vld [vmem:[#allocation7 + $0xc] sm:$0xf]
    %v245 = vld [vmem:[#allocation7 + $0x10] sm:$0xf]
    %v246 = vld [vmem:[#allocation7 + $0x14] sm:$0xf]
    %v247 = vld [vmem:[#allocation7 + $0x18] sm:$0xf]
    %v248 = vld [vmem:[#allocation7 + $0x1c] sm:$0xf]
    %v249 = vld [vmem:[#allocation7 + $0x20] sm:$0xf]
    %v250 = vld [vmem:[#allocation7 + $0x24] sm:$0xf]
    %v251 = vld [vmem:[#allocation7 + $0x28] sm:$0xf]
    %v252 = vld [vmem:[#allocation7 + $0x2c] sm:$0xf]
    %v253 = vld [vmem:[#allocation7 + $0x30] sm:$0xf]
    %v254 = vld [vmem:[#allocation7 + $0x34] sm:$0xf]
    %v255 = vld [vmem:[#allocation7 + $0x38] sm:$0xf]
    %v256 = vld [vmem:[#allocation7 + $0x3c] sm:$0xf]
    %v257 = vld [vmem:[%s8] sm:$0x1]
    %v259 = vperm.slane %v257, 0
    %v277 = vunpack.c.l.b16 %v241
    %v278 = vunpack.c.l.b16 %v242
    %v279 = vunpack.c.l.b16 %v243
    %v280 = vunpack.c.l.b16 %v244
    %v281 = vunpack.c.l.b16 %v245
    %v282 = vunpack.c.l.b16 %v246
    %v283 = vunpack.c.l.b16 %v247
    %v284 = vunpack.c.l.b16 %v248
    %v285 = vunpack.c.l.b16 %v249
    %v286 = vunpack.c.l.b16 %v250
    %v287 = vunpack.c.l.b16 %v251
    %v288 = vunpack.c.l.b16 %v252
    %v289 = vunpack.c.l.b16 %v253
    %v290 = vunpack.c.l.b16 %v254
    %v291 = vunpack.c.l.b16 %v255
    %v292 = vunpack.c.l.b16 %v256
    %v293 = vpack.c.b16 %v278, %v277
    %v294 = vpack.c.b16 %v280, %v279
    %v295 = vpack.c.b16 %v282, %v281
    %v296 = vpack.c.b16 %v284, %v283
    %v297 = vpack.c.b16 %v286, %v285
    %v298 = vpack.c.b16 %v288, %v287
    %v299 = vpack.c.b16 %v290, %v289
    %v300 = vpack.c.b16 %v292, %v291
    %309 = vmatpush.bf16.msra.mxu0 %v300
    %310 = vmatpush.bf16.msra.mxu0 %v299
    %311 = vmatpush.bf16.msra.mxu0 %v298
    %312 = vmatpush.bf16.msra.mxu0 %v297
    %313 = vmatpush.bf16.msra.mxu0 %v296
    %314 = vmatpush.bf16.msra.mxu0 %v295
    %315 = vmatpush.bf16.msra.mxu0 %v294
    %316 = vmatpush.bf16.msra.mxu0 %v293
    %317 = vmatmul.bf16.gmra.mxu0 %v239
    %v318 = vpop.f32.mrf.mxu0
    %v319 = vadd.f32 %v259, %v318
    %v320 = vpop.f32.mrf.mxu0
    %v321 = vadd.f32 %v259, %v320
    %322 = vmatmul.bf16.gmra.mxu0 %v240
    %v323 = vpop.f32.mrf.mxu0
    %v324 = vadd.f32 %v259, %v323
    %v325 = vpop.f32.mrf.mxu0
    %v326 = vadd.f32 %v259, %v325
    %327 = vdwg.mxu0
    %v329 = vperm.slane %v127, 0
    %v331 = vmul.f32 %v319, %v329
    %v332 = vmul.f32 %v321, %v329
    %v333 = vmul.f32 %v324, %v329
    %v334 = vmul.f32 %v326, %v329
    %v336 = vperm.slane %v131, 0
    %v338 = vadd.f32 %v331, %v336
    %v339 = vadd.f32 %v332, %v336
    %v340 = vadd.f32 %v333, %v336
    %v341 = vadd.f32 %v334, %v336
    %v342 = vadd.f32 %v92, %v338
    %v343 = vadd.f32 %v93, %v339
    %v344 = vadd.f32 %v94, %v340
    %v345 = vadd.f32 %v95, %v341
    %v346 = vmax.f32 %v342, 0.0
    %v347 = vmax.f32 %v343, 0.0
    %v348 = vmax.f32 %v344, 0.0
    %v349 = vmax.f32 %v345, 0.0
    %350 = vst [vmem:[#allocation8] sm:$0xff] %v346
    %351 = vst [vmem:[#allocation8 + $0x8] sm:$0xff] %v347
    %352 = vst [vmem:[#allocation8 + $0x10] sm:$0xff] %v348
    %353 = vst [vmem:[#allocation8 + $0x18] sm:$0xff] %v349
    // Predicated region
    $region66: #{tpu_custom_call.1} parent=1 // pred_check
      _
    $region67: #{tpu_custom_call.1} parent=1 // pred_check_branch
      %355 = sbr.rel (0) target = $region69
    $region68: #{tpu_custom_call.1} parent=1 // pred_region
      %357 = vsyncadd [#allocation4], 0
      %s358 = sshll.u32 [#allocation8], 4
      %s359 = int_to_ptr.vmem [resolvable:$true] %s358
      %s360 = sshll.u32 %s13, 4
      %s361 = int_to_ptr.hbm [resolvable:$true] %s360
      %366 = dma.vmem_to_hbm [thread:$0]  %s359, 512, %s361, [#allocation4], 128, 128, 8
    $region69: #{tpu_custom_call.1} parent=1 // pred_fallthru
      _
    // Predicated region
    $region70: #{tpu_custom_call.1} parent=1 // pred_check
      _
    $region71: #{tpu_custom_call.1} parent=1 // pred_check_branch
      %368 = sbr.rel (0) target = $region73
    $region72: #{tpu_custom_call.1} parent=1 // pred_region
      %370 = dma.done [#allocation4], 512
    $region73: #{tpu_custom_call.1} parent=1 // pred_fallthru
      _
    %371 = vsyncpa [#allocation3], 1
    %372 = vsyncpa [#allocation6], 1
    %373 = vsyncpa [#allocation4], 1

</llo_original>
